<compile_context>
chip_gen: v6e
topology: v6e:2x2x1
jax: 0.10.0
libtpu: 0.0.40
codegen_flags: <defaults>
</compile_context>

<pallas_src>
import functools

import jax
import jax.numpy as jnp
from jax import lax
from jax.experimental import pallas as pl
from jax.experimental.pallas import tpu as pltpu

EMBEDDING_DIM = 100
HIDDEN_SIZE = 128
OUTPUT_DIM = 1
VOCAB_SIZE = 50   # stand-in for PreProcessText.get_instance().get_vocab_size()

_BB = 8           # batch rows per grid program (f32 sublane multiple)


def _round_up(x, m):
    return ((x + m - 1) // m) * m


def _rnn_text_kernel(ids_ref, tproj_ref, whh_ref, wfc_ref, bfc_ref,
                     o_ref, xproj_ref, *, seq, bb):
    """One grid program = the full recurrence for one batch block of `bb` rows."""
    m = seq * bb
    vp = tproj_ref.shape[0]

    # ---- Prologue: embedding lookup + input projection + both RNN biases, all timesteps at once.
    # one_hot(ids) @ (emb_table @ W_ih + b)  ==  X_proj, a single (m x vp) x (vp x H) MXU matmul.
    ids = ids_ref[0]                                                    # (m, 1) int32
    iota = lax.broadcasted_iota(jnp.int32, (m, vp), 1)
    onehot = jnp.where(iota == ids, 1.0, 0.0).astype(tproj_ref.dtype)   # (m, vp), exact 0/1
    xproj_ref[...] = jnp.dot(onehot, tproj_ref[...],
                             preferred_element_type=jnp.float32)        # (m, H) f32, VMEM-resident

    # ---- Serial recurrence: h_t = tanh(X_proj[t] + h_{t-1} @ W_hh^T)  (f32 carry, f32 tanh) ----
    whh = whh_ref[...]
    hidden = whh.shape[1]

    def step(t, h):
        row = pl.multiple_of(t * bb, bb)
        x_t = xproj_ref[pl.ds(row, bb), :]                              # (bb, H) f32
        hw = jnp.dot(h.astype(whh.dtype), whh,
                     preferred_element_type=jnp.float32)
        return jnp.tanh(x_t + hw)

    h0 = jnp.zeros((bb, hidden), jnp.float32)
    h = lax.fori_loop(0, seq, step, h0, unroll=True if seq <= 16 else 4)

    # ---- Final linear layer on the last hidden state (lane-padded, dense store) ----
    out = jnp.dot(h.astype(wfc_ref.dtype), wfc_ref[...],
                  preferred_element_type=jnp.float32) + bfc_ref[...]
    o_ref[...] = out.astype(o_ref.dtype)


def rnn_text_forward(text, params, *, mxu_dtype=jnp.bfloat16):
    """text: (batch, seq) int token ids.  Returns (batch, OUTPUT_DIM) float32."""
    emb_table = params["embedding"]
    w_ih, w_hh = params["w_ih"], params["w_hh"]
    b_ih, b_hh = params["b_ih"], params["b_hh"]
    w_fc, b_fc = params["w_fc"], params["b_fc"]

    batch, seq = text.shape
    vocab = emb_table.shape[0]
    hidden = w_hh.shape[0]
    out_dim = w_fc.shape[1]

    bb = _BB
    b_pad = _round_up(batch, bb)
    num_bb = b_pad // bb
    vp = _round_up(vocab, 128)      # lane-pad the folded table (K dim of the prologue matmul)
    op = _round_up(out_dim, 128)    # lane-dense output block

    # Param-only preprocessing (done once, not per-step): fold embedding @ W_ih and both biases.
    table_proj = emb_table @ w_ih + (b_ih + b_hh)[None, :]              # (vocab, hidden) f32
    table_proj = jnp.pad(table_proj, ((0, vp - vocab), (0, 0))).astype(mxu_dtype)
    whh_m = w_hh.astype(mxu_dtype)
    wfc_m = jnp.pad(w_fc, ((0, 0), (0, op - out_dim))).astype(mxu_dtype)
    bfc_p = jnp.pad(b_fc, (0, op - out_dim)).reshape(1, op).astype(jnp.float32)

    # ids laid out per batch block: row (t*bb + b_local) of block i == text[i*bb + b_local, t]
    text_p = jnp.pad(text.astype(jnp.int32), ((0, b_pad - batch), (0, 0)))
    ids = text_p.reshape(num_bb, bb, seq)
    ids = jnp.transpose(ids, (0, 2, 1)).reshape(num_bb, seq * bb, 1)

    kernel = functools.partial(_rnn_text_kernel, seq=seq, bb=bb)
    out = pl.pallas_call(
        kernel,
        out_shape=jax.ShapeDtypeStruct((b_pad, op), jnp.float32),
        grid_spec=pltpu.PrefetchScalarGridSpec(
            num_scalar_prefetch=0,
            grid=(num_bb,),                                   # batch blocks; seq is serial in-kernel
            in_specs=[
                pl.BlockSpec((1, seq * bb, 1), lambda i: (i, 0, 0)),    # token ids for this block
                pl.BlockSpec((vp, hidden), lambda i: (0, 0)),           # emb@W_ih + biases (folded)
                pl.BlockSpec((hidden, hidden), lambda i: (0, 0)),       # W_hh^T
                pl.BlockSpec((hidden, op), lambda i: (0, 0)),           # W_fc^T (lane-padded)
                pl.BlockSpec((1, op), lambda i: (0, 0)),                # b_fc  (lane-padded)
            ],
            out_specs=pl.BlockSpec((bb, op), lambda i: (i, 0)),
            scratch_shapes=[pltpu.VMEM((seq * bb, hidden), jnp.float32)],   # X_proj scratch
        ),
        compiler_params=pltpu.CompilerParams(
            dimension_semantics=("parallel",)),               # batch blocks may split across TCs (v7x)
    )(ids, table_proj, whh_m, wfc_m, bfc_p)

    return out[:batch, :out_dim]


def init_params(key, vocab_size=VOCAB_SIZE, emb=EMBEDDING_DIM,
                hidden=HIDDEN_SIZE, out_dim=OUTPUT_DIM):
    ks = jax.random.split(key, 7)
    bound = 1.0 / jnp.sqrt(hidden)
    u = lambda k, shape, b: jax.random.uniform(k, shape, jnp.float32, -b, b)
    return {
        # nn.Embedding(input_dim, embedding_dim): N(0,1) init
        "embedding": jax.random.normal(ks[0], (vocab_size, emb), jnp.float32),
        # nn.RNN(emb, hidden): stored pre-transposed for "x @ W^T"
        "w_ih": u(ks[1], (emb, hidden), bound),
        "w_hh": u(ks[2], (hidden, hidden), bound),
        "b_ih": u(ks[3], (hidden,), bound),
        "b_hh": u(ks[4], (hidden,), bound),
        # nn.Linear(hidden, out_dim): stored as (hidden, out_dim)
        "w_fc": u(ks[5], (hidden, out_dim), bound),
        "b_fc": u(ks[6], (out_dim,), bound),
    }


def reference_forward(text, params):
    """Pure-JAX f32 reference of the PyTorch forward."""
    text_t = jnp.transpose(text, (1, 0))
    embedded = jnp.take(params["embedding"], text_t, axis=0)   # (seq, batch, emb)
    batch = text.shape[0]
    h = jnp.zeros((batch, HIDDEN_SIZE), jnp.float32)
    b = params["b_ih"] + params["b_hh"]
    for t in range(embedded.shape[0]):
        h = jnp.tanh(embedded[t] @ params["w_ih"] + h @ params["w_hh"] + b)
    return h @ params["w_fc"] + params["b_fc"]


if __name__ == "__main__":
    key = jax.random.PRNGKey(0)
    pkey, tkey = jax.random.split(key)
    params = init_params(pkey)

    batch, seq = 4, 8
    text = jax.random.randint(tkey, (batch, seq), 0, VOCAB_SIZE, dtype=jnp.int32)

    ref = reference_forward(text, params)

    # Exact-dtype path: must match the PyTorch-equivalent reference tightly.
    out_f32 = jax.block_until_ready(rnn_text_forward(text, params, mxu_dtype=jnp.float32))
    assert out_f32.shape == (batch, OUTPUT_DIM), out_f32.shape
    assert jnp.allclose(out_f32, ref, atol=1e-4, rtol=1e-4), (out_f32, ref)

    # bf16-MXU fast path (v5e/v6e/v7x): bf16 operands, f32 accumulation + f32 tanh/carry.
    out_bf16 = jax.block_until_ready(rnn_text_forward(text, params, mxu_dtype=jnp.bfloat16))
    assert out_bf16.shape == (batch, OUTPUT_DIM), out_bf16.shape
    assert jnp.allclose(out_bf16, ref, atol=5e-2, rtol=5e-2), (out_bf16, ref)

    print("KERNEL_OK")
</pallas_src>

<mosaic_0001>
module attributes {stable_mosaic.version = 11 : i64} {
  func.func @_rnn_text_kernel(%arg0: i32, %arg1: memref<1x64x1xi32, #tpu.memory_space<vmem>>, %arg2: memref<128x128xf32, #tpu.memory_space<vmem>>, %arg3: memref<128x128xf32, #tpu.memory_space<vmem>>, %arg4: memref<128x128xf32, #tpu.memory_space<vmem>>, %arg5: memref<1x128xf32, #tpu.memory_space<vmem>>, %arg6: memref<8x128xf32, #tpu.memory_space<vmem>>, %arg7: memref<64x128xf32, #tpu.memory_space<vmem>>) attributes {dimension_semantics = [#tpu.dimension_semantics<parallel>], iteration_bounds = array<i64: 1>, scalar_prefetch = 0 : i64, scratch_operands = 1 : i64, tpu.core_type = #tpu.core_type<tc>, window_params = [{transform_indices = @transform_0, window_bounds = array<i64: 1, 64, 1>}, {pipeline_mode = #tpu.pipeline_mode<synchronous>, transform_indices = @transform_1, window_bounds = array<i64: 128, 128>}, {pipeline_mode = #tpu.pipeline_mode<synchronous>, transform_indices = @transform_2, window_bounds = array<i64: 128, 128>}, {pipeline_mode = #tpu.pipeline_mode<synchronous>, transform_indices = @transform_3, window_bounds = array<i64: 128, 128>}, {pipeline_mode = #tpu.pipeline_mode<synchronous>, transform_indices = @transform_4, window_bounds = array<i64: 1, 128>}, {transform_indices = @transform_5, window_bounds = array<i64: 8, 128>}]} {
    %c0 = arith.constant 0 : index
    %c0_0 = arith.constant 0 : index
    %c0_1 = arith.constant 0 : index
    %0 = vector.load %arg1[%c0, %c0_0, %c0_1] : memref<1x64x1xi32, #tpu.memory_space<vmem>>, vector<1x64x1xi32>
    %1 = vector.shape_cast %0 : vector<1x64x1xi32> to vector<64x1xi32>
    %2 = tpu.iota {dimensions = array<i32: 1>} : vector<64x128xi32>
    %3 = vector.broadcast %1 : vector<64x1xi32> to vector<64x128xi32>
    %4 = arith.cmpi eq, %2, %3 : vector<64x128xi32>
    %cst = arith.constant 1.000000e+00 : f32
    %cst_2 = arith.constant 0.000000e+00 : f32
    %5 = vector.broadcast %cst : f32 to vector<64x128xf32>
    %6 = vector.broadcast %cst_2 : f32 to vector<64x128xf32>
    %7 = arith.select %4, %5, %6 : vector<64x128xi1>, vector<64x128xf32>
    %c0_3 = arith.constant 0 : index
    %c0_4 = arith.constant 0 : index
    %8 = vector.load %arg2[%c0_3, %c0_4] : memref<128x128xf32, #tpu.memory_space<vmem>>, vector<128x128xf32>
    %cst_5 = arith.constant dense<0.000000e+00> : vector<64x128xf32>
    %9 = tpu.matmul %7, %8, %cst_5 {dimension_numbers = #tpu.dot_dimension_numbers<[1], [0], [0], [1], [0, 0, 1, 1], [], []>} : vector<64x128xf32>, vector<128x128xf32>, vector<64x128xf32> -> vector<64x128xf32>
    %c0_6 = arith.constant 0 : index
    %c0_7 = arith.constant 0 : index
    %10 = vector.load %arg7[%c0_6, %c0_7] : memref<64x128xf32, #tpu.memory_space<vmem>>, vector<64x128xf32>
    tpu.vector_store %arg7[%c0_6, %c0_7], %9 {strides = array<i32>} : memref<64x128xf32, #tpu.memory_space<vmem>>, vector<64x128xf32>,
    %c0_8 = arith.constant 0 : index
    %c0_9 = arith.constant 0 : index
    %11 = vector.load %arg3[%c0_8, %c0_9] : memref<128x128xf32, #tpu.memory_space<vmem>>, vector<128x128xf32>
    %cst_10 = arith.constant 0.000000e+00 : f32
    %12 = vector.broadcast %cst_10 : f32 to vector<8x128xf32>
    %c0_i32 = arith.constant 0 : i32
    %c8_i32 = arith.constant 8 : i32
    %13 = arith.muli %c0_i32, %c8_i32 : i32
    %14 = tpu.assume_multiple %13, 8 : i32
    %15 = arith.index_cast %14 : i32 to index
    %c0_11 = arith.constant 0 : index
    %16 = vector.load %arg7[%15, %c0_11] : memref<64x128xf32, #tpu.memory_space<vmem>>, vector<8x128xf32>
    %cst_12 = arith.constant dense<0.000000e+00> : vector<8x128xf32>
    %17 = tpu.matmul %12, %11, %cst_12 {dimension_numbers = #tpu.dot_dimension_numbers<[1], [0], [0], [1], [0, 0, 1, 1], [], []>} : vector<8x128xf32>, vector<128x128xf32>, vector<8x128xf32> -> vector<8x128xf32>
    %18 = arith.addf %16, %17 : vector<8x128xf32>
    %19 = math.tanh %18 : vector<8x128xf32>
    %c1_i32 = arith.constant 1 : i32
    %c8_i32_13 = arith.constant 8 : i32
    %20 = arith.muli %c1_i32, %c8_i32_13 : i32
    %21 = tpu.assume_multiple %20, 8 : i32
    %22 = arith.index_cast %21 : i32 to index
    %c0_14 = arith.constant 0 : index
    %23 = vector.load %arg7[%22, %c0_14] : memref<64x128xf32, #tpu.memory_space<vmem>>, vector<8x128xf32>
    %cst_15 = arith.constant dense<0.000000e+00> : vector<8x128xf32>
    %24 = tpu.matmul %19, %11, %cst_15 {dimension_numbers = #tpu.dot_dimension_numbers<[1], [0], [0], [1], [0, 0, 1, 1], [], []>} : vector<8x128xf32>, vector<128x128xf32>, vector<8x128xf32> -> vector<8x128xf32>
    %25 = arith.addf %23, %24 : vector<8x128xf32>
    %26 = math.tanh %25 : vector<8x128xf32>
    %c2_i32 = arith.constant 2 : i32
    %c8_i32_16 = arith.constant 8 : i32
    %27 = arith.muli %c2_i32, %c8_i32_16 : i32
    %28 = tpu.assume_multiple %27, 8 : i32
    %29 = arith.index_cast %28 : i32 to index
    %c0_17 = arith.constant 0 : index
    %30 = vector.load %arg7[%29, %c0_17] : memref<64x128xf32, #tpu.memory_space<vmem>>, vector<8x128xf32>
    %cst_18 = arith.constant dense<0.000000e+00> : vector<8x128xf32>
    %31 = tpu.matmul %26, %11, %cst_18 {dimension_numbers = #tpu.dot_dimension_numbers<[1], [0], [0], [1], [0, 0, 1, 1], [], []>} : vector<8x128xf32>, vector<128x128xf32>, vector<8x128xf32> -> vector<8x128xf32>
    %32 = arith.addf %30, %31 : vector<8x128xf32>
    %33 = math.tanh %32 : vector<8x128xf32>
    %c3_i32 = arith.constant 3 : i32
    %c8_i32_19 = arith.constant 8 : i32
    %34 = arith.muli %c3_i32, %c8_i32_19 : i32
    %35 = tpu.assume_multiple %34, 8 : i32
    %36 = arith.index_cast %35 : i32 to index
    %c0_20 = arith.constant 0 : index
    %37 = vector.load %arg7[%36, %c0_20] : memref<64x128xf32, #tpu.memory_space<vmem>>, vector<8x128xf32>
    %cst_21 = arith.constant dense<0.000000e+00> : vector<8x128xf32>
    %38 = tpu.matmul %33, %11, %cst_21 {dimension_numbers = #tpu.dot_dimension_numbers<[1], [0], [0], [1], [0, 0, 1, 1], [], []>} : vector<8x128xf32>, vector<128x128xf32>, vector<8x128xf32> -> vector<8x128xf32>
    %39 = arith.addf %37, %38 : vector<8x128xf32>
    %40 = math.tanh %39 : vector<8x128xf32>
    %c4_i32 = arith.constant 4 : i32
    %c8_i32_22 = arith.constant 8 : i32
    %41 = arith.muli %c4_i32, %c8_i32_22 : i32
    %42 = tpu.assume_multiple %41, 8 : i32
    %43 = arith.index_cast %42 : i32 to index
    %c0_23 = arith.constant 0 : index
    %44 = vector.load %arg7[%43, %c0_23] : memref<64x128xf32, #tpu.memory_space<vmem>>, vector<8x128xf32>
    %cst_24 = arith.constant dense<0.000000e+00> : vector<8x128xf32>
    %45 = tpu.matmul %40, %11, %cst_24 {dimension_numbers = #tpu.dot_dimension_numbers<[1], [0], [0], [1], [0, 0, 1, 1], [], []>} : vector<8x128xf32>, vector<128x128xf32>, vector<8x128xf32> -> vector<8x128xf32>
    %46 = arith.addf %44, %45 : vector<8x128xf32>
    %47 = math.tanh %46 : vector<8x128xf32>
    %c5_i32 = arith.constant 5 : i32
    %c8_i32_25 = arith.constant 8 : i32
    %48 = arith.muli %c5_i32, %c8_i32_25 : i32
    %49 = tpu.assume_multiple %48, 8 : i32
    %50 = arith.index_cast %49 : i32 to index
    %c0_26 = arith.constant 0 : index
    %51 = vector.load %arg7[%50, %c0_26] : memref<64x128xf32, #tpu.memory_space<vmem>>, vector<8x128xf32>
    %cst_27 = arith.constant dense<0.000000e+00> : vector<8x128xf32>
    %52 = tpu.matmul %47, %11, %cst_27 {dimension_numbers = #tpu.dot_dimension_numbers<[1], [0], [0], [1], [0, 0, 1, 1], [], []>} : vector<8x128xf32>, vector<128x128xf32>, vector<8x128xf32> -> vector<8x128xf32>
    %53 = arith.addf %51, %52 : vector<8x128xf32>
    %54 = math.tanh %53 : vector<8x128xf32>
    %c6_i32 = arith.constant 6 : i32
    %c8_i32_28 = arith.constant 8 : i32
    %55 = arith.muli %c6_i32, %c8_i32_28 : i32
    %56 = tpu.assume_multiple %55, 8 : i32
    %57 = arith.index_cast %56 : i32 to index
    %c0_29 = arith.constant 0 : index
    %58 = vector.load %arg7[%57, %c0_29] : memref<64x128xf32, #tpu.memory_space<vmem>>, vector<8x128xf32>
    %cst_30 = arith.constant dense<0.000000e+00> : vector<8x128xf32>
    %59 = tpu.matmul %54, %11, %cst_30 {dimension_numbers = #tpu.dot_dimension_numbers<[1], [0], [0], [1], [0, 0, 1, 1], [], []>} : vector<8x128xf32>, vector<128x128xf32>, vector<8x128xf32> -> vector<8x128xf32>
    %60 = arith.addf %58, %59 : vector<8x128xf32>
    %61 = math.tanh %60 : vector<8x128xf32>
    %c7_i32 = arith.constant 7 : i32
    %c8_i32_31 = arith.constant 8 : i32
    %62 = arith.muli %c7_i32, %c8_i32_31 : i32
    %63 = tpu.assume_multiple %62, 8 : i32
    %64 = arith.index_cast %63 : i32 to index
    %c0_32 = arith.constant 0 : index
    %65 = vector.load %arg7[%64, %c0_32] : memref<64x128xf32, #tpu.memory_space<vmem>>, vector<8x128xf32>
    %cst_33 = arith.constant dense<0.000000e+00> : vector<8x128xf32>
    %66 = tpu.matmul %61, %11, %cst_33 {dimension_numbers = #tpu.dot_dimension_numbers<[1], [0], [0], [1], [0, 0, 1, 1], [], []>} : vector<8x128xf32>, vector<128x128xf32>, vector<8x128xf32> -> vector<8x128xf32>
    %67 = arith.addf %65, %66 : vector<8x128xf32>
    %68 = math.tanh %67 : vector<8x128xf32>
    %c8_i32_34 = arith.constant 8 : i32
    %c0_35 = arith.constant 0 : index
    %c0_36 = arith.constant 0 : index
    %69 = vector.load %arg4[%c0_35, %c0_36] : memref<128x128xf32, #tpu.memory_space<vmem>>, vector<128x128xf32>
    %cst_37 = arith.constant dense<0.000000e+00> : vector<8x128xf32>
    %70 = tpu.matmul %68, %69, %cst_37 {dimension_numbers = #tpu.dot_dimension_numbers<[1], [0], [0], [1], [0, 0, 1, 1], [], []>} : vector<8x128xf32>, vector<128x128xf32>, vector<8x128xf32> -> vector<8x128xf32>
    %c0_38 = arith.constant 0 : index
    %c0_39 = arith.constant 0 : index
    %71 = vector.load %arg5[%c0_38, %c0_39] : memref<1x128xf32, #tpu.memory_space<vmem>>, vector<1x128xf32>
    %72 = vector.broadcast %71 : vector<1x128xf32> to vector<8x128xf32>
    %73 = arith.addf %70, %72 : vector<8x128xf32>
    %c0_40 = arith.constant 0 : index
    %c0_41 = arith.constant 0 : index
    %74 = vector.load %arg6[%c0_40, %c0_41] : memref<8x128xf32, #tpu.memory_space<vmem>>, vector<8x128xf32>
    tpu.vector_store %arg6[%c0_40, %c0_41], %73 {strides = array<i32>} : memref<8x128xf32, #tpu.memory_space<vmem>>, vector<8x128xf32>,
    return
  }
  func.func @transform_0(%arg0: i32) -> (i32, i32, i32) {
    %c0_i32 = arith.constant 0 : i32
    %c0_i32_0 = arith.constant 0 : i32
    %c0_i32_1 = arith.constant 0 : i32
    return %arg0, %c0_i32, %c0_i32_0 : i32, i32, i32
  }
  func.func @transform_1(%arg0: i32) -> (i32, i32) {
    %c0_i32 = arith.constant 0 : i32
    %c0_i32_0 = arith.constant 0 : i32
    %c0_i32_1 = arith.constant 0 : i32
    return %c0_i32, %c0_i32_0 : i32, i32
  }
  func.func @transform_2(%arg0: i32) -> (i32, i32) {
    %c0_i32 = arith.constant 0 : i32
    %c0_i32_0 = arith.constant 0 : i32
    %c0_i32_1 = arith.constant 0 : i32
    return %c0_i32, %c0_i32_0 : i32, i32
  }
  func.func @transform_3(%arg0: i32) -> (i32, i32) {
    %c0_i32 = arith.constant 0 : i32
    %c0_i32_0 = arith.constant 0 : i32
    %c0_i32_1 = arith.constant 0 : i32
    return %c0_i32, %c0_i32_0 : i32, i32
  }
  func.func @transform_4(%arg0: i32) -> (i32, i32) {
    %c0_i32 = arith.constant 0 : i32
    %c0_i32_0 = arith.constant 0 : i32
    %c0_i32_1 = arith.constant 0 : i32
    return %c0_i32, %c0_i32_0 : i32, i32
  }
  func.func @transform_5(%arg0: i32) -> (i32, i32) {
    %c0_i32 = arith.constant 0 : i32
    %c0_i32_0 = arith.constant 0 : i32
    return %arg0, %c0_i32 : i32, i32
  }
}

</mosaic_0001>

<llo_original>
// kernel: tpu_custom_call.1
$region0: #{tpu_custom_call.1}
  #allocation0 [shape = 'u32[]', space=smem, size = 0x4, offset = 0x4, fixed_abs, tag = 'smem constant byte address 0x4 - core index']
  #allocation1 [shape = 'u32[144,128]{1,0:T(1,128)}', space=vmem, size = 0x12000, scoped, tag = 'internal scratch']
  #allocation2 [shape = 'f32[64,128]{1,0:T(8,128)}', space=vmem, size = 0x8000, scoped, tag = 'scratch operand']
  %s0 = inlined_call_operand.vmem [shape: s32[1,64,1], index: 0, kind: input, shape index: {}]
  %s1 = inlined_call_operand.hbm [shape: f32[128,128], index: 1, kind: input, shape index: {}]
  %s2 = inlined_call_operand.hbm [shape: f32[128,128], index: 2, kind: input, shape index: {}]
  %s3 = inlined_call_operand.hbm [shape: f32[128,128], index: 3, kind: input, shape index: {}]
  %s4 = inlined_call_operand.vmem [shape: f32[1,128], index: 4, kind: input, shape index: {}]
  %s5 = inlined_call_operand.hbm [shape: f32[8,128], index: 5, kind: output, shape index: {}]
  %s6 = sld [smem:[#allocation0]]
  $region42: #{tpu_custom_call.1} parent=0
    _
  %s8 = ssub.s32 1, %s6
  %s9 = scalar_select 0, %s8, %s6
  $region1: #{tpu_custom_call.1} parent=0
    #allocation3 [shape = 'u8[65536]{0}', space=vmem, size = 0x10000, scoped, tag = 'input window, operand 1, single buffered']
    #allocation4 [shape = 's32[1]{0}', space=sflag, size = 0x4, scoped, tag = 'scoped memory for tpu_custom_call.1']
    #allocation5 [shape = 's32[1]{0}', space=sflag, size = 0x4, scoped, tag = 'scoped memory for tpu_custom_call.1']
    #allocation6 [shape = 'u8[65536]{0}', space=vmem, size = 0x10000, scoped, tag = 'input window, operand 2, single buffered']
    #allocation7 [shape = 's32[1]{0}', space=sflag, size = 0x4, scoped, tag = 'scoped memory for tpu_custom_call.1']
    #allocation8 [shape = 'u8[65536]{0}', space=vmem, size = 0x10000, scoped, tag = 'input window, operand 3, single buffered']
    #allocation9 [shape = 'u8[4096]{0}', space=vmem, size = 0x1000, scoped, tag = 'output window, operand 0, single buffered']
    %10 = vsyncpa [#allocation4], 0
    %11 = vsyncpa [#allocation7], 0
    %12 = vsyncpa [#allocation5], 0
    // Predicated region
    $region2: #{tpu_custom_call.1} parent=1 // pred_check
      _
    $region3: #{tpu_custom_call.1} parent=1 // pred_check_branch
      %14 = sbr.rel (0) target = $region5
    $region4: #{tpu_custom_call.1} parent=1 // pred_region
      _
    $region5: #{tpu_custom_call.1} parent=1 // pred_fallthru
      _
    // Predicated region
    $region6: #{tpu_custom_call.1} parent=1 // pred_check
      _
    $region7: #{tpu_custom_call.1} parent=1 // pred_check_branch
      %16 = sbr.rel (0) target = $region9
    $region8: #{tpu_custom_call.1} parent=1 // pred_region
      %s18 = ssub.s32 2048, 2048
      %19 = vsyncadd [#allocation4], %s18
      %s20 = sshll.u32 [#allocation3], 4
      %s21 = int_to_ptr.vmem [resolvable:$true] %s20
      %26 = dma.hbm_to_vmem [thread:$0]  %s1, 2048, %s21, [#allocation4], 128, 128, 8
    $region9: #{tpu_custom_call.1} parent=1 // pred_fallthru
      _
    // Predicated region
    $region10: #{tpu_custom_call.1} parent=1 // pred_check
      _
    $region11: #{tpu_custom_call.1} parent=1 // pred_check_branch
      %28 = sbr.rel (0) target = $region13
    $region12: #{tpu_custom_call.1} parent=1 // pred_region
      %s30 = ssub.s32 2048, 2048
      %31 = vsyncadd [#allocation7], %s30
      %s32 = sshll.u32 [#allocation6], 4
      %s33 = int_to_ptr.vmem [resolvable:$true] %s32
      %38 = dma.hbm_to_vmem [thread:$0]  %s2, 2048, %s33, [#allocation7], 128, 128, 8
    $region13: #{tpu_custom_call.1} parent=1 // pred_fallthru
      _
    // Predicated region
    $region14: #{tpu_custom_call.1} parent=1 // pred_check
      _
    $region15: #{tpu_custom_call.1} parent=1 // pred_check_branch
      %40 = sbr.rel (0) target = $region17
    $region16: #{tpu_custom_call.1} parent=1 // pred_region
      %s42 = ssub.s32 2048, 2048
      %43 = vsyncadd [#allocation7], %s42
      %s44 = sshll.u32 [#allocation8], 4
      %s45 = int_to_ptr.vmem [resolvable:$true] %s44
      %50 = dma.hbm_to_vmem [thread:$0]  %s3, 2048, %s45, [#allocation7], 128, 128, 8
    $region17: #{tpu_custom_call.1} parent=1 // pred_fallthru
      _
    // Predicated region
    $region18: #{tpu_custom_call.1} parent=1 // pred_check
      _
    $region19: #{tpu_custom_call.1} parent=1 // pred_check_branch
      %52 = sbr.rel (0) target = $region21
    $region20: #{tpu_custom_call.1} parent=1 // pred_region
      _
    $region21: #{tpu_custom_call.1} parent=1 // pred_fallthru
      _
    // Predicated region
    $region22: #{tpu_custom_call.1} parent=1 // pred_check
      _
    $region23: #{tpu_custom_call.1} parent=1 // pred_check_branch
      %54 = sbr.rel (0) target = $region25
    $region24: #{tpu_custom_call.1} parent=1 // pred_region
      %55 = dma.done [#allocation4], 2048
    $region25: #{tpu_custom_call.1} parent=1 // pred_fallthru
      _
    // Predicated region
    $region26: #{tpu_custom_call.1} parent=1 // pred_check
      _
    $region27: #{tpu_custom_call.1} parent=1 // pred_check_branch
      %57 = sbr.rel (0) target = $region29
    $region28: #{tpu_custom_call.1} parent=1 // pred_region
      %58 = dma.done [#allocation7], 2048
    $region29: #{tpu_custom_call.1} parent=1 // pred_fallthru
      _
    // Predicated region
    $region30: #{tpu_custom_call.1} parent=1 // pred_check
      _
    $region31: #{tpu_custom_call.1} parent=1 // pred_check_branch
      %60 = sbr.rel (0) target = $region33
    $region32: #{tpu_custom_call.1} parent=1 // pred_region
      %61 = dma.done [#allocation7], 2048
    $region33: #{tpu_custom_call.1} parent=1 // pred_fallthru
      _
    %v62 = vld [vmem:[%s0] sm:$0xff]
    %v63 = vld [vmem:[%s0 + $0x8] sm:$0xff]
    %v64 = vld [vmem:[%s0 + $0x10] sm:$0xff]
    %v65 = vld [vmem:[%s0 + $0x18] sm:$0xff]
    %v66 = vld [vmem:[%s0 + $0x20] sm:$0xff]
    %v67 = vld [vmem:[%s0 + $0x28] sm:$0xff]
    %v68 = vld [vmem:[%s0 + $0x30] sm:$0xff]
    %v69 = vld [vmem:[%s0 + $0x38] sm:$0xff]
    %v70 = vlaneseq
    %v71 = vand.u32 %v70, 127
    %72 = vset.pattern.permute.xlu0 0
    %73 = vperm.xlu0 %72, %v62
    %v74 = vpop.permute.xlu0 %73
    %75 = vset.pattern.permute.xlu0 0
    %76 = vperm.xlu0 %75, %v63
    %v77 = vpop.permute.xlu0 %76
    %78 = vset.pattern.permute.xlu0 0
    %79 = vperm.xlu0 %78, %v64
    %v80 = vpop.permute.xlu0 %79
    %81 = vset.pattern.permute.xlu0 0
    %82 = vperm.xlu0 %81, %v65
    %v83 = vpop.permute.xlu0 %82
    %84 = vset.pattern.permute.xlu0 0
    %85 = vperm.xlu0 %84, %v66
    %v86 = vpop.permute.xlu0 %85
    %87 = vset.pattern.permute.xlu0 0
    %88 = vperm.xlu0 %87, %v67
    %v89 = vpop.permute.xlu0 %88
    %90 = vset.pattern.permute.xlu0 0
    %91 = vperm.xlu0 %90, %v68
    %v92 = vpop.permute.xlu0 %91
    %93 = vset.pattern.permute.xlu0 0
    %94 = vperm.xlu0 %93, %v69
    %v95 = vpop.permute.xlu0 %94
    %vm96 = vcmp.eq.s32.totalorder %v71, %v74
    %vm97 = vcmp.eq.s32.totalorder %v71, %v77
    %vm98 = vcmp.eq.s32.totalorder %v71, %v80
    %vm99 = vcmp.eq.s32.totalorder %v71, %v83
    %vm100 = vcmp.eq.s32.totalorder %v71, %v86
    %vm101 = vcmp.eq.s32.totalorder %v71, %v89
    %vm102 = vcmp.eq.s32.totalorder %v71, %v92
    %vm103 = vcmp.eq.s32.totalorder %v71, %v95
    %v104 = vsel %vm96, 1.0, 0.0
    %v105 = vsel %vm97, 1.0, 0.0
    %v106 = vsel %vm98, 1.0, 0.0
    %v107 = vsel %vm99, 1.0, 0.0
    %v108 = vsel %vm100, 1.0, 0.0
    %v109 = vsel %vm101, 1.0, 0.0
    %v110 = vsel %vm102, 1.0, 0.0
    %v111 = vsel %vm103, 1.0, 0.0
    %v112 = vld [vmem:[#allocation3] sm:$0xff]
    %v113 = vld [vmem:[#allocation3 + $0x8] sm:$0xff]
    %v114 = vld [vmem:[#allocation3 + $0x10] sm:$0xff]
    %v115 = vld [vmem:[#allocation3 + $0x18] sm:$0xff]
    %v116 = vld [vmem:[#allocation3 + $0x20] sm:$0xff]
    %v117 = vld [vmem:[#allocation3 + $0x28] sm:$0xff]
    %v118 = vld [vmem:[#allocation3 + $0x30] sm:$0xff]
    %v119 = vld [vmem:[#allocation3 + $0x38] sm:$0xff]
    %v120 = vld [vmem:[#allocation3 + $0x40] sm:$0xff]
    %v121 = vld [vmem:[#allocation3 + $0x48] sm:$0xff]
    %v122 = vld [vmem:[#allocation3 + $0x50] sm:$0xff]
    %v123 = vld [vmem:[#allocation3 + $0x58] sm:$0xff]
    %v124 = vld [vmem:[#allocation3 + $0x60] sm:$0xff]
    %v125 = vld [vmem:[#allocation3 + $0x68] sm:$0xff]
    %v126 = vld [vmem:[#allocation3 + $0x70] sm:$0xff]
    %v127 = vld [vmem:[#allocation3 + $0x78] sm:$0xff]
    %128 = vmatprep.subr.mxu0 0.0
    %129 = vmatpush1.msra.mxu0 %v127
    %130 = vmatprep.subr.mxu0 0.0
    %131 = vmatpush1.msra.mxu0 %v126
    %132 = vmatprep.subr.mxu0 0.0
    %133 = vmatpush1.msra.mxu0 %v125
    %134 = vmatprep.subr.mxu0 0.0
    %135 = vmatpush1.msra.mxu0 %v124
    %136 = vmatprep.subr.mxu0 0.0
    %137 = vmatpush1.msra.mxu0 %v123
    %138 = vmatprep.subr.mxu0 0.0
    %139 = vmatpush1.msra.mxu0 %v122
    %140 = vmatprep.subr.mxu0 0.0
    %141 = vmatpush1.msra.mxu0 %v121
    %142 = vmatprep.subr.mxu0 0.0
    %143 = vmatpush1.msra.mxu0 %v120
    %144 = vmatprep.subr.mxu0 0.0
    %145 = vmatpush1.msra.mxu0 %v119
    %146 = vmatprep.subr.mxu0 0.0
    %147 = vmatpush1.msra.mxu0 %v118
    %148 = vmatprep.subr.mxu0 0.0
    %149 = vmatpush1.msra.mxu0 %v117
    %150 = vmatprep.subr.mxu0 0.0
    %151 = vmatpush1.msra.mxu0 %v116
    %152 = vmatprep.subr.mxu0 0.0
    %153 = vmatpush1.msra.mxu0 %v115
    %154 = vmatprep.subr.mxu0 0.0
    %155 = vmatpush1.msra.mxu0 %v114
    %156 = vmatprep.subr.mxu0 0.0
    %157 = vmatpush1.msra.mxu0 %v113
    %158 = vmatprep.subr.mxu0 0.0
    %159 = vmatpush1.msra.mxu0 %v112
    %160 = vmatprep.subr.mxu0 0.0
    %161 = vmatpush2.msra.mxu0 0.0
    %162 = vmatprep.subr.mxu0 0.0
    %163 = vmatpush2.msra.mxu0 0.0
    %164 = vmatprep.subr.mxu0 0.0
    %165 = vmatpush2.msra.mxu0 0.0
    %166 = vmatprep.subr.mxu0 0.0
    %167 = vmatpush2.msra.mxu0 0.0
    %168 = vmatprep.subr.mxu0 0.0
    %169 = vmatpush2.msra.mxu0 0.0
    %170 = vmatprep.subr.mxu0 0.0
    %171 = vmatpush2.msra.mxu0 0.0
    %172 = vmatprep.subr.mxu0 0.0
    %173 = vmatpush2.msra.mxu0 0.0
    %174 = vmatprep.subr.mxu0 0.0
    %175 = vmatpush2.msra.mxu0 0.0
    %176 = vmatprep.subr.mxu0 0.0
    %177 = vmatpush2.msra.mxu0 0.0
    %178 = vmatprep.subr.mxu0 0.0
    %179 = vmatpush2.msra.mxu0 0.0
    %180 = vmatprep.subr.mxu0 0.0
    %181 = vmatpush2.msra.mxu0 0.0
    %182 = vmatprep.subr.mxu0 0.0
    %183 = vmatpush2.msra.mxu0 0.0
    %184 = vmatprep.subr.mxu0 0.0
    %185 = vmatpush2.msra.mxu0 0.0
    %186 = vmatprep.subr.mxu0 0.0
    %187 = vmatpush2.msra.mxu0 0.0
    %188 = vmatprep.subr.mxu0 0.0
    %189 = vmatpush2.msra.mxu0 0.0
    %190 = vmatprep.subr.mxu0 0.0
    %191 = vmatpush2.msra.mxu0 0.0
    %192 = vmatprep.mubr.f32.mxu0 0.0
    %193 = vmatmul.mubr.f32.gmra.mxu0 %v104
    %v194 = vpop.f32.mrf.mxu0
    %v195 = vadd.f32 0.0, %v194
    %v196 = vpop.f32.mrf.mxu0
    %197 = vmatprep.mubr.f32.mxu0 0.0
    %198 = vmatmul.mubr.f32.gmra.mxu0 %v105
    %v199 = vpop.f32.mrf.mxu0
    %v200 = vadd.f32 0.0, %v199
    %v201 = vpop.f32.mrf.mxu0
    %202 = vmatprep.mubr.f32.mxu0 0.0
    %203 = vmatmul.mubr.f32.gmra.mxu0 %v106
    %v204 = vpop.f32.mrf.mxu0
    %v205 = vadd.f32 0.0, %v204
    %v206 = vpop.f32.mrf.mxu0
    %207 = vmatprep.mubr.f32.mxu0 0.0
    %208 = vmatmul.mubr.f32.gmra.mxu0 %v107
    %v209 = vpop.f32.mrf.mxu0
    %v210 = vadd.f32 0.0, %v209
    %v211 = vpop.f32.mrf.mxu0
    %212 = vmatprep.mubr.f32.mxu0 0.0
    %213 = vmatmul.mubr.f32.gmra.mxu0 %v108
    %v214 = vpop.f32.mrf.mxu0
    %v215 = vadd.f32 0.0, %v214
    %v216 = vpop.f32.mrf.mxu0
    %217 = vmatprep.mubr.f32.mxu0 0.0
    %218 = vmatmul.mubr.f32.gmra.mxu0 %v109
    %v219 = vpop.f32.mrf.mxu0
    %v220 = vadd.f32 0.0, %v219
    %v221 = vpop.f32.mrf.mxu0
    %222 = vmatprep.mubr.f32.mxu0 0.0
    %223 = vmatmul.mubr.f32.gmra.mxu0 %v110
    %v224 = vpop.f32.mrf.mxu0
    %v225 = vadd.f32 0.0, %v224
    %v226 = vpop.f32.mrf.mxu0
    %227 = vmatprep.mubr.f32.mxu0 0.0
    %228 = vmatmul.mubr.f32.gmra.mxu0 %v111
    %v229 = vpop.f32.mrf.mxu0
    %v230 = vadd.f32 0.0, %v229
    %v231 = vpop.f32.mrf.mxu0
    %232 = vdwg.mxu0
    %233 = vst [vmem:[#allocation2] sm:$0xff] %v195
    %234 = vst [vmem:[#allocation2 + $0x8] sm:$0xff] %v200
    %235 = vst [vmem:[#allocation2 + $0x10] sm:$0xff] %v205
    %236 = vst [vmem:[#allocation2 + $0x18] sm:$0xff] %v210
    %237 = vst [vmem:[#allocation2 + $0x20] sm:$0xff] %v215
    %238 = vst [vmem:[#allocation2 + $0x28] sm:$0xff] %v220
    %239 = vst [vmem:[#allocation2 + $0x30] sm:$0xff] %v225
    %240 = vst [vmem:[#allocation2 + $0x38] sm:$0xff] %v230
    %v241 = vld [vmem:[#allocation6] sm:$0xff]
    %v242 = vld [vmem:[#allocation6 + $0x8] sm:$0xff]
    %v243 = vld [vmem:[#allocation6 + $0x10] sm:$0xff]
    %v244 = vld [vmem:[#allocation6 + $0x18] sm:$0xff]
    %v245 = vld [vmem:[#allocation6 + $0x20] sm:$0xff]
    %v246 = vld [vmem:[#allocation6 + $0x28] sm:$0xff]
    %v247 = vld [vmem:[#allocation6 + $0x30] sm:$0xff]
    %v248 = vld [vmem:[#allocation6 + $0x38] sm:$0xff]
    %v249 = vld [vmem:[#allocation6 + $0x40] sm:$0xff]
    %v250 = vld [vmem:[#allocation6 + $0x48] sm:$0xff]
    %v251 = vld [vmem:[#allocation6 + $0x50] sm:$0xff]
    %v252 = vld [vmem:[#allocation6 + $0x58] sm:$0xff]
    %v253 = vld [vmem:[#allocation6 + $0x60] sm:$0xff]
    %v254 = vld [vmem:[#allocation6 + $0x68] sm:$0xff]
    %v255 = vld [vmem:[#allocation6 + $0x70] sm:$0xff]
    %v256 = vld [vmem:[#allocation6 + $0x78] sm:$0xff]
    %v257 = vld [vmem:[#allocation2] sm:$0xff]
    %258 = vmatprep.subr.mxu0 0.0
    %259 = vmatpush1.msra.mxu0 %v256
    %260 = vmatprep.subr.mxu0 0.0
    %261 = vmatpush1.msra.mxu0 %v255
    %262 = vmatprep.subr.mxu0 0.0
    %263 = vmatpush1.msra.mxu0 %v254
    %264 = vmatprep.subr.mxu0 0.0
    %265 = vmatpush1.msra.mxu0 %v253
    %266 = vmatprep.subr.mxu0 0.0
    %267 = vmatpush1.msra.mxu0 %v252
    %268 = vmatprep.subr.mxu0 0.0
    %269 = vmatpush1.msra.mxu0 %v251
    %270 = vmatprep.subr.mxu0 0.0
    %271 = vmatpush1.msra.mxu0 %v250
    %272 = vmatprep.subr.mxu0 0.0
    %273 = vmatpush1.msra.mxu0 %v249
    %274 = vmatprep.subr.mxu0 0.0
    %275 = vmatpush1.msra.mxu0 %v248
    %276 = vmatprep.subr.mxu0 0.0
    %277 = vmatpush1.msra.mxu0 %v247
    %278 = vmatprep.subr.mxu0 0.0
    %279 = vmatpush1.msra.mxu0 %v246
    %280 = vmatprep.subr.mxu0 0.0
    %281 = vmatpush1.msra.mxu0 %v245
    %282 = vmatprep.subr.mxu0 0.0
    %283 = vmatpush1.msra.mxu0 %v244
    %284 = vmatprep.subr.mxu0 0.0
    %285 = vmatpush1.msra.mxu0 %v243
    %286 = vmatprep.subr.mxu0 0.0
    %287 = vmatpush1.msra.mxu0 %v242
    %288 = vmatprep.subr.mxu0 0.0
    %289 = vmatpush1.msra.mxu0 %v241
    %290 = vmatprep.subr.mxu0 0.0
    %291 = vmatpush2.msra.mxu0 0.0
    %292 = vmatprep.subr.mxu0 0.0
    %293 = vmatpush2.msra.mxu0 0.0
    %294 = vmatprep.subr.mxu0 0.0
    %295 = vmatpush2.msra.mxu0 0.0
    %296 = vmatprep.subr.mxu0 0.0
    %297 = vmatpush2.msra.mxu0 0.0
    %298 = vmatprep.subr.mxu0 0.0
    %299 = vmatpush2.msra.mxu0 0.0
    %300 = vmatprep.subr.mxu0 0.0
    %301 = vmatpush2.msra.mxu0 0.0
    %302 = vmatprep.subr.mxu0 0.0
    %303 = vmatpush2.msra.mxu0 0.0
    %304 = vmatprep.subr.mxu0 0.0
    %305 = vmatpush2.msra.mxu0 0.0
    %306 = vmatprep.subr.mxu0 0.0
    %307 = vmatpush2.msra.mxu0 0.0
    %308 = vmatprep.subr.mxu0 0.0
    %309 = vmatpush2.msra.mxu0 0.0
    %310 = vmatprep.subr.mxu0 0.0
    %311 = vmatpush2.msra.mxu0 0.0
    %312 = vmatprep.subr.mxu0 0.0
    %313 = vmatpush2.msra.mxu0 0.0
    %314 = vmatprep.subr.mxu0 0.0
    %315 = vmatpush2.msra.mxu0 0.0
    %316 = vmatprep.subr.mxu0 0.0
    %317 = vmatpush2.msra.mxu0 0.0
    %318 = vmatprep.subr.mxu0 0.0
    %319 = vmatpush2.msra.mxu0 0.0
    %320 = vmatprep.subr.mxu0 0.0
    %321 = vmatpush2.msra.mxu0 0.0
    %322 = vmatprep.mubr.f32.mxu0 0.0
    %323 = vmatmul.mubr.f32.gmra.mxu0 0.0
    %v324 = vpop.f32.mrf.mxu0
    %v325 = vadd.f32 0.0, %v324
    %v326 = vpop.f32.mrf.mxu0
    %327 = vdwg.mxu0
    %v328 = vadd.f32 %v257, %v325
    %v329 = vtanh.pop %v328
    %s330 = scalar_lea.vmem [#allocation2], 8
    %v331 = vld [vmem:[%s330] sm:$0xff]
    %332 = vmatprep.subr.mxu0 0.0
    %333 = vmatpush1.msra.mxu0 %v256
    %334 = vmatprep.subr.mxu0 0.0
    %335 = vmatpush1.msra.mxu0 %v255
    %336 = vmatprep.subr.mxu0 0.0
    %337 = vmatpush1.msra.mxu0 %v254
    %338 = vmatprep.subr.mxu0 0.0
    %339 = vmatpush1.msra.mxu0 %v253
    %340 = vmatprep.subr.mxu0 0.0
    %341 = vmatpush1.msra.mxu0 %v252
    %342 = vmatprep.subr.mxu0 0.0
    %343 = vmatpush1.msra.mxu0 %v251
    %344 = vmatprep.subr.mxu0 0.0
    %345 = vmatpush1.msra.mxu0 %v250
    %346 = vmatprep.subr.mxu0 0.0
    %347 = vmatpush1.msra.mxu0 %v249
    %348 = vmatprep.subr.mxu0 0.0
    %349 = vmatpush1.msra.mxu0 %v248
    %350 = vmatprep.subr.mxu0 0.0
    %351 = vmatpush1.msra.mxu0 %v247
    %352 = vmatprep.subr.mxu0 0.0
    %353 = vmatpush1.msra.mxu0 %v246
    %354 = vmatprep.subr.mxu0 0.0
    %355 = vmatpush1.msra.mxu0 %v245
    %356 = vmatprep.subr.mxu0 0.0
    %357 = vmatpush1.msra.mxu0 %v244
    %358 = vmatprep.subr.mxu0 0.0
    %359 = vmatpush1.msra.mxu0 %v243
    %360 = vmatprep.subr.mxu0 0.0
    %361 = vmatpush1.msra.mxu0 %v242
    %362 = vmatprep.subr.mxu0 0.0
    %363 = vmatpush1.msra.mxu0 %v241
    %364 = vmatprep.subr.mxu0 0.0
    %365 = vmatpush2.msra.mxu0 0.0
    %366 = vmatprep.subr.mxu0 0.0
    %367 = vmatpush2.msra.mxu0 0.0
    %368 = vmatprep.subr.mxu0 0.0
    %369 = vmatpush2.msra.mxu0 0.0
    %370 = vmatprep.subr.mxu0 0.0
    %371 = vmatpush2.msra.mxu0 0.0
    %372 = vmatprep.subr.mxu0 0.0
    %373 = vmatpush2.msra.mxu0 0.0
    %374 = vmatprep.subr.mxu0 0.0
    %375 = vmatpush2.msra.mxu0 0.0
    %376 = vmatprep.subr.mxu0 0.0
    %377 = vmatpush2.msra.mxu0 0.0
    %378 = vmatprep.subr.mxu0 0.0
    %379 = vmatpush2.msra.mxu0 0.0
    %380 = vmatprep.subr.mxu0 0.0
    %381 = vmatpush2.msra.mxu0 0.0
    %382 = vmatprep.subr.mxu0 0.0
    %383 = vmatpush2.msra.mxu0 0.0
    %384 = vmatprep.subr.mxu0 0.0
    %385 = vmatpush2.msra.mxu0 0.0
    %386 = vmatprep.subr.mxu0 0.0
    %387 = vmatpush2.msra.mxu0 0.0
    %388 = vmatprep.subr.mxu0 0.0
    %389 = vmatpush2.msra.mxu0 0.0
    %390 = vmatprep.subr.mxu0 0.0
    %391 = vmatpush2.msra.mxu0 0.0
    %392 = vmatprep.subr.mxu0 0.0
    %393 = vmatpush2.msra.mxu0 0.0
    %394 = vmatprep.subr.mxu0 0.0
    %395 = vmatpush2.msra.mxu0 0.0
    %396 = vmatprep.mubr.f32.mxu0 0.0
    %397 = vmatmul.mubr.f32.gmra.mxu0 %v329
    %v398 = vpop.f32.mrf.mxu0
    %v399 = vadd.f32 0.0, %v398
    %v400 = vpop.f32.mrf.mxu0
    %401 = vdwg.mxu0
    %v402 = vadd.f32 %v331, %v399
    %v403 = vtanh.pop %v402
    %s404 = scalar_lea.vmem [#allocation2], 16
    %v405 = vld [vmem:[%s404] sm:$0xff]
    %406 = vmatprep.subr.mxu0 0.0
    %407 = vmatpush1.msra.mxu0 %v256
    %408 = vmatprep.subr.mxu0 0.0
    %409 = vmatpush1.msra.mxu0 %v255
    %410 = vmatprep.subr.mxu0 0.0
    %411 = vmatpush1.msra.mxu0 %v254
    %412 = vmatprep.subr.mxu0 0.0
    %413 = vmatpush1.msra.mxu0 %v253
    %414 = vmatprep.subr.mxu0 0.0
    %415 = vmatpush1.msra.mxu0 %v252
    %416 = vmatprep.subr.mxu0 0.0
    %417 = vmatpush1.msra.mxu0 %v251
    %418 = vmatprep.subr.mxu0 0.0
    %419 = vmatpush1.msra.mxu0 %v250
    %420 = vmatprep.subr.mxu0 0.0
    %421 = vmatpush1.msra.mxu0 %v249
    %422 = vmatprep.subr.mxu0 0.0
    %423 = vmatpush1.msra.mxu0 %v248
    %424 = vmatprep.subr.mxu0 0.0
    %425 = vmatpush1.msra.mxu0 %v247
    %426 = vmatprep.subr.mxu0 0.0
    %427 = vmatpush1.msra.mxu0 %v246
    %428 = vmatprep.subr.mxu0 0.0
    %429 = vmatpush1.msra.mxu0 %v245
    %430 = vmatprep.subr.mxu0 0.0
    %431 = vmatpush1.msra.mxu0 %v244
    %432 = vmatprep.subr.mxu0 0.0
    %433 = vmatpush1.msra.mxu0 %v243
    %434 = vmatprep.subr.mxu0 0.0
    %435 = vmatpush1.msra.mxu0 %v242
    %436 = vmatprep.subr.mxu0 0.0
    %437 = vmatpush1.msra.mxu0 %v241
    %438 = vmatprep.subr.mxu0 0.0
    %439 = vmatpush2.msra.mxu0 0.0
    %440 = vmatprep.subr.mxu0 0.0
    %441 = vmatpush2.msra.mxu0 0.0
    %442 = vmatprep.subr.mxu0 0.0
    %443 = vmatpush2.msra.mxu0 0.0
    %444 = vmatprep.subr.mxu0 0.0
    %445 = vmatpush2.msra.mxu0 0.0
    %446 = vmatprep.subr.mxu0 0.0
    %447 = vmatpush2.msra.mxu0 0.0
    %448 = vmatprep.subr.mxu0 0.0
    %449 = vmatpush2.msra.mxu0 0.0
    %450 = vmatprep.subr.mxu0 0.0
    %451 = vmatpush2.msra.mxu0 0.0
    %452 = vmatprep.subr.mxu0 0.0
    %453 = vmatpush2.msra.mxu0 0.0
    %454 = vmatprep.subr.mxu0 0.0
    %455 = vmatpush2.msra.mxu0 0.0
    %456 = vmatprep.subr.mxu0 0.0
    %457 = vmatpush2.msra.mxu0 0.0
    %458 = vmatprep.subr.mxu0 0.0
    %459 = vmatpush2.msra.mxu0 0.0
    %460 = vmatprep.subr.mxu0 0.0
    %461 = vmatpush2.msra.mxu0 0.0
    %462 = vmatprep.subr.mxu0 0.0
    %463 = vmatpush2.msra.mxu0 0.0
    %464 = vmatprep.subr.mxu0 0.0
    %465 = vmatpush2.msra.mxu0 0.0
    %466 = vmatprep.subr.mxu0 0.0
    %467 = vmatpush2.msra.mxu0 0.0
    %468 = vmatprep.subr.mxu0 0.0
    %469 = vmatpush2.msra.mxu0 0.0
    %470 = vmatprep.mubr.f32.mxu0 0.0
    %471 = vmatmul.mubr.f32.gmra.mxu0 %v403
    %v472 = vpop.f32.mrf.mxu0
    %v473 = vadd.f32 0.0, %v472
    %v474 = vpop.f32.mrf.mxu0
    %475 = vdwg.mxu0
    %v476 = vadd.f32 %v405, %v473
    %v477 = vtanh.pop %v476
    %s478 = scalar_lea.vmem [#allocation2], 24
    %v479 = vld [vmem:[%s478] sm:$0xff]
    %480 = vmatprep.subr.mxu0 0.0
    %481 = vmatpush1.msra.mxu0 %v256
    %482 = vmatprep.subr.mxu0 0.0
    %483 = vmatpush1.msra.mxu0 %v255
    %484 = vmatprep.subr.mxu0 0.0
    %485 = vmatpush1.msra.mxu0 %v254
    %486 = vmatprep.subr.mxu0 0.0
    %487 = vmatpush1.msra.mxu0 %v253
    %488 = vmatprep.subr.mxu0 0.0
    %489 = vmatpush1.msra.mxu0 %v252
    %490 = vmatprep.subr.mxu0 0.0
    %491 = vmatpush1.msra.mxu0 %v251
    %492 = vmatprep.subr.mxu0 0.0
    %493 = vmatpush1.msra.mxu0 %v250
    %494 = vmatprep.subr.mxu0 0.0
    %495 = vmatpush1.msra.mxu0 %v249
    %496 = vmatprep.subr.mxu0 0.0
    %497 = vmatpush1.msra.mxu0 %v248
    %498 = vmatprep.subr.mxu0 0.0
    %499 = vmatpush1.msra.mxu0 %v247
    %500 = vmatprep.subr.mxu0 0.0
    %501 = vmatpush1.msra.mxu0 %v246
    %502 = vmatprep.subr.mxu0 0.0
    %503 = vmatpush1.msra.mxu0 %v245
    %504 = vmatprep.subr.mxu0 0.0
    %505 = vmatpush1.msra.mxu0 %v244
    %506 = vmatprep.subr.mxu0 0.0
    %507 = vmatpush1.msra.mxu0 %v243
    %508 = vmatprep.subr.mxu0 0.0
    %509 = vmatpush1.msra.mxu0 %v242
    %510 = vmatprep.subr.mxu0 0.0
    %511 = vmatpush1.msra.mxu0 %v241
    %512 = vmatprep.subr.mxu0 0.0
    %513 = vmatpush2.msra.mxu0 0.0
    %514 = vmatprep.subr.mxu0 0.0
    %515 = vmatpush2.msra.mxu0 0.0
    %516 = vmatprep.subr.mxu0 0.0
    %517 = vmatpush2.msra.mxu0 0.0
    %518 = vmatprep.subr.mxu0 0.0
    %519 = vmatpush2.msra.mxu0 0.0
    %520 = vmatprep.subr.mxu0 0.0
    %521 = vmatpush2.msra.mxu0 0.0
    %522 = vmatprep.subr.mxu0 0.0
    %523 = vmatpush2.msra.mxu0 0.0
    %524 = vmatprep.subr.mxu0 0.0
    %525 = vmatpush2.msra.mxu0 0.0
    %526 = vmatprep.subr.mxu0 0.0
    %527 = vmatpush2.msra.mxu0 0.0
    %528 = vmatprep.subr.mxu0 0.0
    %529 = vmatpush2.msra.mxu0 0.0
    %530 = vmatprep.subr.mxu0 0.0
    %531 = vmatpush2.msra.mxu0 0.0
    %532 = vmatprep.subr.mxu0 0.0
    %533 = vmatpush2.msra.mxu0 0.0
    %534 = vmatprep.subr.mxu0 0.0
    %535 = vmatpush2.msra.mxu0 0.0
    %536 = vmatprep.subr.mxu0 0.0
    %537 = vmatpush2.msra.mxu0 0.0
    %538 = vmatprep.subr.mxu0 0.0
    %539 = vmatpush2.msra.mxu0 0.0
    %540 = vmatprep.subr.mxu0 0.0
    %541 = vmatpush2.msra.mxu0 0.0
    %542 = vmatprep.subr.mxu0 0.0
    %543 = vmatpush2.msra.mxu0 0.0
    %544 = vmatprep.mubr.f32.mxu0 0.0
    %545 = vmatmul.mubr.f32.gmra.mxu0 %v477
    %v546 = vpop.f32.mrf.mxu0
    %v547 = vadd.f32 0.0, %v546
    %v548 = vpop.f32.mrf.mxu0
    %549 = vdwg.mxu0
    %v550 = vadd.f32 %v479, %v547
    %v551 = vtanh.pop %v550
    %s552 = scalar_lea.vmem [#allocation2], 32
    %v553 = vld [vmem:[%s552] sm:$0xff]
    %554 = vmatprep.subr.mxu0 0.0
    %555 = vmatpush1.msra.mxu0 %v256
    %556 = vmatprep.subr.mxu0 0.0
    %557 = vmatpush1.msra.mxu0 %v255
    %558 = vmatprep.subr.mxu0 0.0
    %559 = vmatpush1.msra.mxu0 %v254
    %560 = vmatprep.subr.mxu0 0.0
    %561 = vmatpush1.msra.mxu0 %v253
    %562 = vmatprep.subr.mxu0 0.0
    %563 = vmatpush1.msra.mxu0 %v252
    %564 = vmatprep.subr.mxu0 0.0
    %565 = vmatpush1.msra.mxu0 %v251
    %566 = vmatprep.subr.mxu0 0.0
    %567 = vmatpush1.msra.mxu0 %v250
    %568 = vmatprep.subr.mxu0 0.0
    %569 = vmatpush1.msra.mxu0 %v249
    %570 = vmatprep.subr.mxu0 0.0
    %571 = vmatpush1.msra.mxu0 %v248
    %572 = vmatprep.subr.mxu0 0.0
    %573 = vmatpush1.msra.mxu0 %v247
    %574 = vmatprep.subr.mxu0 0.0
    %575 = vmatpush1.msra.mxu0 %v246
    %576 = vmatprep.subr.mxu0 0.0
    %577 = vmatpush1.msra.mxu0 %v245
    %578 = vmatprep.subr.mxu0 0.0
    %579 = vmatpush1.msra.mxu0 %v244
    %580 = vmatprep.subr.mxu0 0.0
    %581 = vmatpush1.msra.mxu0 %v243
    %582 = vmatprep.subr.mxu0 0.0
    %583 = vmatpush1.msra.mxu0 %v242
    %584 = vmatprep.subr.mxu0 0.0
    %585 = vmatpush1.msra.mxu0 %v241
    %586 = vmatprep.subr.mxu0 0.0
    %587 = vmatpush2.msra.mxu0 0.0
    %588 = vmatprep.subr.mxu0 0.0
    %589 = vmatpush2.msra.mxu0 0.0
    %590 = vmatprep.subr.mxu0 0.0
    %591 = vmatpush2.msra.mxu0 0.0
    %592 = vmatprep.subr.mxu0 0.0
    %593 = vmatpush2.msra.mxu0 0.0
    %594 = vmatprep.subr.mxu0 0.0
    %595 = vmatpush2.msra.mxu0 0.0
    %596 = vmatprep.subr.mxu0 0.0
    %597 = vmatpush2.msra.mxu0 0.0
    %598 = vmatprep.subr.mxu0 0.0
    %599 = vmatpush2.msra.mxu0 0.0
    %600 = vmatprep.subr.mxu0 0.0
    %601 = vmatpush2.msra.mxu0 0.0
    %602 = vmatprep.subr.mxu0 0.0
    %603 = vmatpush2.msra.mxu0 0.0
    %604 = vmatprep.subr.mxu0 0.0
    %605 = vmatpush2.msra.mxu0 0.0
    %606 = vmatprep.subr.mxu0 0.0
    %607 = vmatpush2.msra.mxu0 0.0
    %608 = vmatprep.subr.mxu0 0.0
    %609 = vmatpush2.msra.mxu0 0.0
    %610 = vmatprep.subr.mxu0 0.0
    %611 = vmatpush2.msra.mxu0 0.0
    %612 = vmatprep.subr.mxu0 0.0
    %613 = vmatpush2.msra.mxu0 0.0
    %614 = vmatprep.subr.mxu0 0.0
    %615 = vmatpush2.msra.mxu0 0.0
    %616 = vmatprep.subr.mxu0 0.0
    %617 = vmatpush2.msra.mxu0 0.0
    %618 = vmatprep.mubr.f32.mxu0 0.0
    %619 = vmatmul.mubr.f32.gmra.mxu0 %v551
    %v620 = vpop.f32.mrf.mxu0
    %v621 = vadd.f32 0.0, %v620
    %v622 = vpop.f32.mrf.mxu0
    %623 = vdwg.mxu0
    %v624 = vadd.f32 %v553, %v621
    %v625 = vtanh.pop %v624
    %s626 = scalar_lea.vmem [#allocation2], 40
    %v627 = vld [vmem:[%s626] sm:$0xff]
    %628 = vmatprep.subr.mxu0 0.0
    %629 = vmatpush1.msra.mxu0 %v256
    %630 = vmatprep.subr.mxu0 0.0
    %631 = vmatpush1.msra.mxu0 %v255
    %632 = vmatprep.subr.mxu0 0.0
    %633 = vmatpush1.msra.mxu0 %v254
    %634 = vmatprep.subr.mxu0 0.0
    %635 = vmatpush1.msra.mxu0 %v253
    %636 = vmatprep.subr.mxu0 0.0
    %637 = vmatpush1.msra.mxu0 %v252
    %638 = vmatprep.subr.mxu0 0.0
    %639 = vmatpush1.msra.mxu0 %v251
    %640 = vmatprep.subr.mxu0 0.0
    %641 = vmatpush1.msra.mxu0 %v250
    %642 = vmatprep.subr.mxu0 0.0
    %643 = vmatpush1.msra.mxu0 %v249
    %644 = vmatprep.subr.mxu0 0.0
    %645 = vmatpush1.msra.mxu0 %v248
    %646 = vmatprep.subr.mxu0 0.0
    %647 = vmatpush1.msra.mxu0 %v247
    %648 = vmatprep.subr.mxu0 0.0
    %649 = vmatpush1.msra.mxu0 %v246
    %650 = vmatprep.subr.mxu0 0.0
    %651 = vmatpush1.msra.mxu0 %v245
    %652 = vmatprep.subr.mxu0 0.0
    %653 = vmatpush1.msra.mxu0 %v244
    %654 = vmatprep.subr.mxu0 0.0
    %655 = vmatpush1.msra.mxu0 %v243
    %656 = vmatprep.subr.mxu0 0.0
    %657 = vmatpush1.msra.mxu0 %v242
    %658 = vmatprep.subr.mxu0 0.0
    %659 = vmatpush1.msra.mxu0 %v241
    %660 = vmatprep.subr.mxu0 0.0
    %661 = vmatpush2.msra.mxu0 0.0
    %662 = vmatprep.subr.mxu0 0.0
    %663 = vmatpush2.msra.mxu0 0.0
    %664 = vmatprep.subr.mxu0 0.0
    %665 = vmatpush2.msra.mxu0 0.0
    %666 = vmatprep.subr.mxu0 0.0
    %667 = vmatpush2.msra.mxu0 0.0
    %668 = vmatprep.subr.mxu0 0.0
    %669 = vmatpush2.msra.mxu0 0.0
    %670 = vmatprep.subr.mxu0 0.0
    %671 = vmatpush2.msra.mxu0 0.0
    %672 = vmatprep.subr.mxu0 0.0
    %673 = vmatpush2.msra.mxu0 0.0
    %674 = vmatprep.subr.mxu0 0.0
    %675 = vmatpush2.msra.mxu0 0.0
    %676 = vmatprep.subr.mxu0 0.0
    %677 = vmatpush2.msra.mxu0 0.0
    %678 = vmatprep.subr.mxu0 0.0
    %679 = vmatpush2.msra.mxu0 0.0
    %680 = vmatprep.subr.mxu0 0.0
    %681 = vmatpush2.msra.mxu0 0.0
    %682 = vmatprep.subr.mxu0 0.0
    %683 = vmatpush2.msra.mxu0 0.0
    %684 = vmatprep.subr.mxu0 0.0
    %685 = vmatpush2.msra.mxu0 0.0
    %686 = vmatprep.subr.mxu0 0.0
    %687 = vmatpush2.msra.mxu0 0.0
    %688 = vmatprep.subr.mxu0 0.0
    %689 = vmatpush2.msra.mxu0 0.0
    %690 = vmatprep.subr.mxu0 0.0
    %691 = vmatpush2.msra.mxu0 0.0
    %692 = vmatprep.mubr.f32.mxu0 0.0
    %693 = vmatmul.mubr.f32.gmra.mxu0 %v625
    %v694 = vpop.f32.mrf.mxu0
    %v695 = vadd.f32 0.0, %v694
    %v696 = vpop.f32.mrf.mxu0
    %697 = vdwg.mxu0
    %v698 = vadd.f32 %v627, %v695
    %v699 = vtanh.pop %v698
    %s700 = scalar_lea.vmem [#allocation2], 48
    %v701 = vld [vmem:[%s700] sm:$0xff]
    %702 = vmatprep.subr.mxu0 0.0
    %703 = vmatpush1.msra.mxu0 %v256
    %704 = vmatprep.subr.mxu0 0.0
    %705 = vmatpush1.msra.mxu0 %v255
    %706 = vmatprep.subr.mxu0 0.0
    %707 = vmatpush1.msra.mxu0 %v254
    %708 = vmatprep.subr.mxu0 0.0
    %709 = vmatpush1.msra.mxu0 %v253
    %710 = vmatprep.subr.mxu0 0.0
    %711 = vmatpush1.msra.mxu0 %v252
    %712 = vmatprep.subr.mxu0 0.0
    %713 = vmatpush1.msra.mxu0 %v251
    %714 = vmatprep.subr.mxu0 0.0
    %715 = vmatpush1.msra.mxu0 %v250
    %716 = vmatprep.subr.mxu0 0.0
    %717 = vmatpush1.msra.mxu0 %v249
    %718 = vmatprep.subr.mxu0 0.0
    %719 = vmatpush1.msra.mxu0 %v248
    %720 = vmatprep.subr.mxu0 0.0
    %721 = vmatpush1.msra.mxu0 %v247
    %722 = vmatprep.subr.mxu0 0.0
    %723 = vmatpush1.msra.mxu0 %v246
    %724 = vmatprep.subr.mxu0 0.0
    %725 = vmatpush1.msra.mxu0 %v245
    %726 = vmatprep.subr.mxu0 0.0
    %727 = vmatpush1.msra.mxu0 %v244
    %728 = vmatprep.subr.mxu0 0.0
    %729 = vmatpush1.msra.mxu0 %v243
    %730 = vmatprep.subr.mxu0 0.0
    %731 = vmatpush1.msra.mxu0 %v242
    %732 = vmatprep.subr.mxu0 0.0
    %733 = vmatpush1.msra.mxu0 %v241
    %734 = vmatprep.subr.mxu0 0.0
    %735 = vmatpush2.msra.mxu0 0.0
    %736 = vmatprep.subr.mxu0 0.0
    %737 = vmatpush2.msra.mxu0 0.0
    %738 = vmatprep.subr.mxu0 0.0
    %739 = vmatpush2.msra.mxu0 0.0
    %740 = vmatprep.subr.mxu0 0.0
    %741 = vmatpush2.msra.mxu0 0.0
    %742 = vmatprep.subr.mxu0 0.0
    %743 = vmatpush2.msra.mxu0 0.0
    %744 = vmatprep.subr.mxu0 0.0
    %745 = vmatpush2.msra.mxu0 0.0
    %746 = vmatprep.subr.mxu0 0.0
    %747 = vmatpush2.msra.mxu0 0.0
    %748 = vmatprep.subr.mxu0 0.0
    %749 = vmatpush2.msra.mxu0 0.0
    %750 = vmatprep.subr.mxu0 0.0
    %751 = vmatpush2.msra.mxu0 0.0
    %752 = vmatprep.subr.mxu0 0.0
    %753 = vmatpush2.msra.mxu0 0.0
    %754 = vmatprep.subr.mxu0 0.0
    %755 = vmatpush2.msra.mxu0 0.0
    %756 = vmatprep.subr.mxu0 0.0
    %757 = vmatpush2.msra.mxu0 0.0
    %758 = vmatprep.subr.mxu0 0.0
    %759 = vmatpush2.msra.mxu0 0.0
    %760 = vmatprep.subr.mxu0 0.0
    %761 = vmatpush2.msra.mxu0 0.0
    %762 = vmatprep.subr.mxu0 0.0
    %763 = vmatpush2.msra.mxu0 0.0
    %764 = vmatprep.subr.mxu0 0.0
    %765 = vmatpush2.msra.mxu0 0.0
    %766 = vmatprep.mubr.f32.mxu0 0.0
    %767 = vmatmul.mubr.f32.gmra.mxu0 %v699
    %v768 = vpop.f32.mrf.mxu0
    %v769 = vadd.f32 0.0, %v768
    %v770 = vpop.f32.mrf.mxu0
    %771 = vdwg.mxu0
    %v772 = vadd.f32 %v701, %v769
    %v773 = vtanh.pop %v772
    %s774 = scalar_lea.vmem [#allocation2], 56
    %v775 = vld [vmem:[%s774] sm:$0xff]
    %776 = vmatprep.subr.mxu0 0.0
    %777 = vmatpush1.msra.mxu0 %v256
    %778 = vmatprep.subr.mxu0 0.0
    %779 = vmatpush1.msra.mxu0 %v255
    %780 = vmatprep.subr.mxu0 0.0
    %781 = vmatpush1.msra.mxu0 %v254
    %782 = vmatprep.subr.mxu0 0.0
    %783 = vmatpush1.msra.mxu0 %v253
    %784 = vmatprep.subr.mxu0 0.0
    %785 = vmatpush1.msra.mxu0 %v252
    %786 = vmatprep.subr.mxu0 0.0
    %787 = vmatpush1.msra.mxu0 %v251
    %788 = vmatprep.subr.mxu0 0.0
    %789 = vmatpush1.msra.mxu0 %v250
    %790 = vmatprep.subr.mxu0 0.0
    %791 = vmatpush1.msra.mxu0 %v249
    %792 = vmatprep.subr.mxu0 0.0
    %793 = vmatpush1.msra.mxu0 %v248
    %794 = vmatprep.subr.mxu0 0.0
    %795 = vmatpush1.msra.mxu0 %v247
    %796 = vmatprep.subr.mxu0 0.0
    %797 = vmatpush1.msra.mxu0 %v246
    %798 = vmatprep.subr.mxu0 0.0
    %799 = vmatpush1.msra.mxu0 %v245
    %800 = vmatprep.subr.mxu0 0.0
    %801 = vmatpush1.msra.mxu0 %v244
    %802 = vmatprep.subr.mxu0 0.0
    %803 = vmatpush1.msra.mxu0 %v243
    %804 = vmatprep.subr.mxu0 0.0
    %805 = vmatpush1.msra.mxu0 %v242
    %806 = vmatprep.subr.mxu0 0.0
    %807 = vmatpush1.msra.mxu0 %v241
    %808 = vmatprep.subr.mxu0 0.0
    %809 = vmatpush2.msra.mxu0 0.0
    %810 = vmatprep.subr.mxu0 0.0
    %811 = vmatpush2.msra.mxu0 0.0
    %812 = vmatprep.subr.mxu0 0.0
    %813 = vmatpush2.msra.mxu0 0.0
    %814 = vmatprep.subr.mxu0 0.0
    %815 = vmatpush2.msra.mxu0 0.0
    %816 = vmatprep.subr.mxu0 0.0
    %817 = vmatpush2.msra.mxu0 0.0
    %818 = vmatprep.subr.mxu0 0.0
    %819 = vmatpush2.msra.mxu0 0.0
    %820 = vmatprep.subr.mxu0 0.0
    %821 = vmatpush2.msra.mxu0 0.0
    %822 = vmatprep.subr.mxu0 0.0
    %823 = vmatpush2.msra.mxu0 0.0
    %824 = vmatprep.subr.mxu0 0.0
    %825 = vmatpush2.msra.mxu0 0.0
    %826 = vmatprep.subr.mxu0 0.0
    %827 = vmatpush2.msra.mxu0 0.0
    %828 = vmatprep.subr.mxu0 0.0
    %829 = vmatpush2.msra.mxu0 0.0
    %830 = vmatprep.subr.mxu0 0.0
    %831 = vmatpush2.msra.mxu0 0.0
    %832 = vmatprep.subr.mxu0 0.0
    %833 = vmatpush2.msra.mxu0 0.0
    %834 = vmatprep.subr.mxu0 0.0
    %835 = vmatpush2.msra.mxu0 0.0
    %836 = vmatprep.subr.mxu0 0.0
    %837 = vmatpush2.msra.mxu0 0.0
    %838 = vmatprep.subr.mxu0 0.0
    %839 = vmatpush2.msra.mxu0 0.0
    %840 = vmatprep.mubr.f32.mxu0 0.0
    %841 = vmatmul.mubr.f32.gmra.mxu0 %v773
    %v842 = vpop.f32.mrf.mxu0
    %v843 = vadd.f32 0.0, %v842
    %v844 = vpop.f32.mrf.mxu0
    %845 = vdwg.mxu0
    %v846 = vadd.f32 %v775, %v843
    %v847 = vtanh.pop %v846
    %v848 = vld [vmem:[#allocation8] sm:$0xff]
    %v849 = vld [vmem:[#allocation8 + $0x8] sm:$0xff]
    %v850 = vld [vmem:[#allocation8 + $0x10] sm:$0xff]
    %v851 = vld [vmem:[#allocation8 + $0x18] sm:$0xff]
    %v852 = vld [vmem:[#allocation8 + $0x20] sm:$0xff]
    %v853 = vld [vmem:[#allocation8 + $0x28] sm:$0xff]
    %v854 = vld [vmem:[#allocation8 + $0x30] sm:$0xff]
    %v855 = vld [vmem:[#allocation8 + $0x38] sm:$0xff]
    %v856 = vld [vmem:[#allocation8 + $0x40] sm:$0xff]
    %v857 = vld [vmem:[#allocation8 + $0x48] sm:$0xff]
    %v858 = vld [vmem:[#allocation8 + $0x50] sm:$0xff]
    %v859 = vld [vmem:[#allocation8 + $0x58] sm:$0xff]
    %v860 = vld [vmem:[#allocation8 + $0x60] sm:$0xff]
    %v861 = vld [vmem:[#allocation8 + $0x68] sm:$0xff]
    %v862 = vld [vmem:[#allocation8 + $0x70] sm:$0xff]
    %v863 = vld [vmem:[#allocation8 + $0x78] sm:$0xff]
    %v864 = vld [vmem:[%s4] sm:$0x1]
    %v866 = vlaneseq
    %v867 = vshrl.u32 %v866, 7
    %v868 = vsub.s32 0, %v867
    %v869 = vrot.slane %v864, %v868
    %871 = vmatprep.subr.mxu0 0.0
    %872 = vmatpush1.msra.mxu0 %v863
    %873 = vmatprep.subr.mxu0 0.0
    %874 = vmatpush1.msra.mxu0 %v862
    %875 = vmatprep.subr.mxu0 0.0
    %876 = vmatpush1.msra.mxu0 %v861
    %877 = vmatprep.subr.mxu0 0.0
    %878 = vmatpush1.msra.mxu0 %v860
    %879 = vmatprep.subr.mxu0 0.0
    %880 = vmatpush1.msra.mxu0 %v859
    %881 = vmatprep.subr.mxu0 0.0
    %882 = vmatpush1.msra.mxu0 %v858
    %883 = vmatprep.subr.mxu0 0.0
    %884 = vmatpush1.msra.mxu0 %v857
    %885 = vmatprep.subr.mxu0 0.0
    %886 = vmatpush1.msra.mxu0 %v856
    %887 = vmatprep.subr.mxu0 0.0
    %888 = vmatpush1.msra.mxu0 %v855
    %889 = vmatprep.subr.mxu0 0.0
    %890 = vmatpush1.msra.mxu0 %v854
    %891 = vmatprep.subr.mxu0 0.0
    %892 = vmatpush1.msra.mxu0 %v853
    %893 = vmatprep.subr.mxu0 0.0
    %894 = vmatpush1.msra.mxu0 %v852
    %895 = vmatprep.subr.mxu0 0.0
    %896 = vmatpush1.msra.mxu0 %v851
    %897 = vmatprep.subr.mxu0 0.0
    %898 = vmatpush1.msra.mxu0 %v850
    %899 = vmatprep.subr.mxu0 0.0
    %900 = vmatpush1.msra.mxu0 %v849
    %901 = vmatprep.subr.mxu0 0.0
    %902 = vmatpush1.msra.mxu0 %v848
    %903 = vmatprep.subr.mxu0 0.0
    %904 = vmatpush2.msra.mxu0 0.0
    %905 = vmatprep.subr.mxu0 0.0
    %906 = vmatpush2.msra.mxu0 0.0
    %907 = vmatprep.subr.mxu0 0.0
    %908 = vmatpush2.msra.mxu0 0.0
    %909 = vmatprep.subr.mxu0 0.0
    %910 = vmatpush2.msra.mxu0 0.0
    %911 = vmatprep.subr.mxu0 0.0
    %912 = vmatpush2.msra.mxu0 0.0
    %913 = vmatprep.subr.mxu0 0.0
    %914 = vmatpush2.msra.mxu0 0.0
    %915 = vmatprep.subr.mxu0 0.0
    %916 = vmatpush2.msra.mxu0 0.0
    %917 = vmatprep.subr.mxu0 0.0
    %918 = vmatpush2.msra.mxu0 0.0
    %919 = vmatprep.subr.mxu0 0.0
    %920 = vmatpush2.msra.mxu0 0.0
    %921 = vmatprep.subr.mxu0 0.0
    %922 = vmatpush2.msra.mxu0 0.0
    %923 = vmatprep.subr.mxu0 0.0
    %924 = vmatpush2.msra.mxu0 0.0
    %925 = vmatprep.subr.mxu0 0.0
    %926 = vmatpush2.msra.mxu0 0.0
    %927 = vmatprep.subr.mxu0 0.0
    %928 = vmatpush2.msra.mxu0 0.0
    %929 = vmatprep.subr.mxu0 0.0
    %930 = vmatpush2.msra.mxu0 0.0
    %931 = vmatprep.subr.mxu0 0.0
    %932 = vmatpush2.msra.mxu0 0.0
    %933 = vmatprep.subr.mxu0 0.0
    %934 = vmatpush2.msra.mxu0 0.0
    %935 = vmatprep.mubr.f32.mxu0 0.0
    %936 = vmatmul.mubr.f32.gmra.mxu0 %v847
    %v937 = vpop.f32.mrf.mxu0
    %v938 = vadd.f32 %v869, %v937
    %v939 = vpop.f32.mrf.mxu0
    %940 = vdwg.mxu0
    %941 = vst [vmem:[#allocation9] sm:$0xff] %v938
    // Predicated region
    $region34: #{tpu_custom_call.1} parent=1 // pred_check
      _
    $region35: #{tpu_custom_call.1} parent=1 // pred_check_branch
      %943 = sbr.rel (0) target = $region37
    $region36: #{tpu_custom_call.1} parent=1 // pred_region
      %s945 = ssub.s32 128, 128
      %946 = vsyncadd [#allocation5], %s945
      %s948 = sshll.u32 [#allocation9], 4
      %s949 = int_to_ptr.vmem [resolvable:$true] %s948
      %951 = dma.vmem_to_hbm [thread:$0]  %s949, 128, %s5, [#allocation5]
    $region37: #{tpu_custom_call.1} parent=1 // pred_fallthru
      _
    // Predicated region
    $region38: #{tpu_custom_call.1} parent=1 // pred_check
      _
    $region39: #{tpu_custom_call.1} parent=1 // pred_check_branch
      %953 = sbr.rel (0) target = $region41
    $region40: #{tpu_custom_call.1} parent=1 // pred_region
      %954 = dma.done [#allocation5], 128
    $region41: #{tpu_custom_call.1} parent=1 // pred_fallthru
      _
    %955 = vsyncpa [#allocation4], 1
    %956 = vsyncpa [#allocation7], 1
    %957 = vsyncpa [#allocation5], 1

</llo_original>
